<compile_context>
chip_gen: v6e
topology: v6e:2x2x1
jax: 0.10.0
libtpu: 0.0.40
codegen_flags: <defaults>
</compile_context>

<pallas_src>
import functools

import jax
import jax.numpy as jnp
from jax.experimental import pallas as pl
from jax.experimental.pallas import tpu as pltpu

LANES = 128          # vreg lane width (last dim of the slab)
SUBLANES = 8         # vreg sublane count (accumulator height)
MAX_ROW_TILE = 2048  # 2048 x 128 x 4B = 1 MiB per input block (x2 inputs x2 bufs = 4 MiB)


def _rmsle_kernel(total_n, p_ref, t_ref, o_ref, acc_ref):
    # acc_ref: VMEM (8, 128) f32 vector accumulator, persists across grid steps.
    @pl.when(pl.program_id(0) == 0)
    def _():
        acc_ref[...] = jnp.zeros_like(acc_ref)

    # Spec semantics: plain log (not log1p).  Inputs arrive pre-cast to f32.
    d = jnp.log(p_ref[...]) - jnp.log(t_ref[...])
    sq = d * d
    rows = sq.shape[0]
    # Fold the block's sublane groups into the (8,128) accumulator: pure VPU adds,
    # no cross-lane reduction per step.
    acc_ref[...] += jnp.sum(sq.reshape(rows // SUBLANES, SUBLANES, LANES), axis=0)

    @pl.when(pl.program_id(0) == pl.num_programs(0) - 1)
    def _():
        # Single epilogue cross-lane/sublane reduction + sqrt.
        o_ref[0, 0] = jnp.sqrt(jnp.sum(acc_ref[...]) / jnp.float32(total_n))


def rmsle_loss(pred, truth):
    """sqrt(mean((log(pred) - log(truth))**2)) computed in a Pallas TPU kernel."""
    assert pred.shape == truth.shape, "pred/truth must have identical shapes"
    total_n = pred.size

    p = jnp.ravel(pred).astype(jnp.float32)
    t = jnp.ravel(truth).astype(jnp.float32)

    rows = pl.cdiv(total_n, LANES)
    # Largest block that divides the (padded) slab, multiple of 8 sublanes,
    # capped at MAX_ROW_TILE (VMEM-safe on every TPU generation).
    row_tile = min(MAX_ROW_TILE, ((rows + SUBLANES - 1) // SUBLANES) * SUBLANES)
    padded_rows = ((rows + row_tile - 1) // row_tile) * row_tile
    padded_n = padded_rows * LANES

    if padded_n != total_n:
        pad = padded_n - total_n
        # Pad both sides with 1.0: log(1)=0 -> zero contribution to the sum.
        p = jnp.concatenate([p, jnp.ones((pad,), jnp.float32)])
        t = jnp.concatenate([t, jnp.ones((pad,), jnp.float32)])

    p2 = p.reshape(padded_rows, LANES)
    t2 = t.reshape(padded_rows, LANES)
    grid = (padded_rows // row_tile,)

    out = pl.pallas_call(
        functools.partial(_rmsle_kernel, total_n),
        out_shape=jax.ShapeDtypeStruct((1, 1), jnp.float32),
        grid_spec=pltpu.PrefetchScalarGridSpec(
            num_scalar_prefetch=0,
            grid=grid,
            in_specs=[
                pl.BlockSpec((row_tile, LANES), lambda i: (i, 0)),
                pl.BlockSpec((row_tile, LANES), lambda i: (i, 0)),
            ],
            out_specs=pl.BlockSpec(
                (1, 1), lambda i: (0, 0), memory_space=pltpu.SMEM
            ),
            scratch_shapes=[pltpu.VMEM((SUBLANES, LANES), jnp.float32)],
        ),
        compiler_params=pltpu.CompilerParams(
            # Single sequential reduction axis (accumulator carried across steps).
            dimension_semantics=("arbitrary",),
        ),
    )(p2, t2)

    return out[0, 0]


if __name__ == "__main__":
    key = jax.random.PRNGKey(0)
    k1, k2 = jax.random.split(key)
    shape = (2, 4, 16, 16)  # NCHW, same convention as the PyTorch module
    # log() requires positive inputs (same requirement as the torch module).
    pred = jax.random.uniform(k1, shape, dtype=jnp.float32, minval=0.1, maxval=2.0)
    truth = jax.random.uniform(k2, shape, dtype=jnp.float32, minval=0.1, maxval=2.0)

    loss = jax.block_until_ready(rmsle_loss(pred, truth))

    # sanity check against plain-JAX reference of the module's forward
    ref = jnp.sqrt(jnp.mean((jnp.log(pred) - jnp.log(truth)) ** 2))
    assert jnp.allclose(loss, ref, rtol=1e-5, atol=1e-6), (loss, ref)

    print("KERNEL_OK")
</pallas_src>

<mosaic_0001>
module attributes {stable_mosaic.version = 11 : i64} {
  func.func @_rmsle_kernel(%arg0: i32, %arg1: memref<16x128xf32, #tpu.memory_space<vmem>>, %arg2: memref<16x128xf32, #tpu.memory_space<vmem>>, %arg3: memref<1x1xf32, #tpu.memory_space<smem>>, %arg4: memref<8x128xf32, #tpu.memory_space<vmem>>) attributes {dimension_semantics = [#tpu.dimension_semantics<arbitrary>], iteration_bounds = array<i64: 1>, scalar_prefetch = 0 : i64, scratch_operands = 1 : i64, tpu.core_type = #tpu.core_type<tc>, window_params = [{transform_indices = @transform_0, window_bounds = array<i64: 16, 128>}, {transform_indices = @transform_1, window_bounds = array<i64: 16, 128>}, {transform_indices = @transform_2, window_bounds = array<i64: 1, 1>}]} {
    %c0_i32 = arith.constant 0 : i32
    %0 = arith.cmpi eq, %arg0, %c0_i32 : i32
    %1 = arith.extui %0 : i1 to i32
    %c0_i32_0 = arith.constant 0 : i32
    %2 = arith.cmpi ne, %1, %c0_i32_0 : i32
    scf.if %2 {
      %cst_10 = arith.constant 0.000000e+00 : f32
      %17 = vector.broadcast %cst_10 : f32 to vector<8x128xf32>
      %c0_11 = arith.constant 0 : index
      %c0_12 = arith.constant 0 : index
      %18 = vector.load %arg4[%c0_11, %c0_12] : memref<8x128xf32, #tpu.memory_space<vmem>>, vector<8x128xf32>
      tpu.vector_store %arg4[%c0_11, %c0_12], %17 {strides = array<i32>} : memref<8x128xf32, #tpu.memory_space<vmem>>, vector<8x128xf32>,
    } else {
    }
    %c0 = arith.constant 0 : index
    %c0_1 = arith.constant 0 : index
    %3 = vector.load %arg1[%c0, %c0_1] : memref<16x128xf32, #tpu.memory_space<vmem>>, vector<16x128xf32>
    %4 = math.log %3 : vector<16x128xf32>
    %c0_2 = arith.constant 0 : index
    %c0_3 = arith.constant 0 : index
    %5 = vector.load %arg2[%c0_2, %c0_3] : memref<16x128xf32, #tpu.memory_space<vmem>>, vector<16x128xf32>
    %6 = math.log %5 : vector<16x128xf32>
    %7 = arith.subf %4, %6 : vector<16x128xf32>
    %8 = arith.mulf %7, %7 : vector<16x128xf32>
    %c0_4 = arith.constant 0 : index
    %c0_5 = arith.constant 0 : index
    %9 = vector.load %arg4[%c0_4, %c0_5] : memref<8x128xf32, #tpu.memory_space<vmem>>, vector<8x128xf32>
    %10 = vector.shape_cast %8 : vector<16x128xf32> to vector<2x8x128xf32>
    %cst = arith.constant dense<0.000000e+00> : vector<8x128xf32>
    %11 = vector.multi_reduction <add>, %10, %cst [0] : vector<2x8x128xf32> to vector<8x128xf32>
    %12 = arith.addf %9, %11 : vector<8x128xf32>
    %c0_6 = arith.constant 0 : index
    %c0_7 = arith.constant 0 : index
    %13 = vector.load %arg4[%c0_6, %c0_7] : memref<8x128xf32, #tpu.memory_space<vmem>>, vector<8x128xf32>
    tpu.vector_store %arg4[%c0_6, %c0_7], %12 {strides = array<i32>} : memref<8x128xf32, #tpu.memory_space<vmem>>, vector<8x128xf32>,
    %c0_i32_8 = arith.constant 0 : i32
    %14 = arith.cmpi eq, %arg0, %c0_i32_8 : i32
    %15 = arith.extui %14 : i1 to i32
    %c0_i32_9 = arith.constant 0 : i32
    %16 = arith.cmpi ne, %15, %c0_i32_9 : i32
    scf.if %16 {
      %c0_10 = arith.constant 0 : index
      %c0_11 = arith.constant 0 : index
      %17 = vector.load %arg4[%c0_10, %c0_11] : memref<8x128xf32, #tpu.memory_space<vmem>>, vector<8x128xf32>
      %18 = vector.shape_cast %17 : vector<8x128xf32> to vector<1x8x128xf32>
      %cst_12 = arith.constant dense<0.000000e+00> : vector<1xf32>
      %19 = vector.multi_reduction <add>, %18, %cst_12 [1, 2] : vector<1x8x128xf32> to vector<1xf32>
      %20 = vector.shape_cast %19 : vector<1xf32> to vector<1x1x1xf32>
      %21 = vector.extract %20[0, 0, 0] : f32 from vector<1x1x1xf32>
      %cst_13 = arith.constant 2.048000e+03 : f32
      %22 = arith.divf %21, %cst_13 : f32
      %23 = math.sqrt %22 : f32
      %c0_14 = arith.constant 0 : index
      %c0_15 = arith.constant 0 : index
      %24 = memref.load %arg3[%c0_14, %c0_15] : memref<1x1xf32, #tpu.memory_space<smem>>
      memref.store %23, %arg3[%c0_14, %c0_15] : memref<1x1xf32, #tpu.memory_space<smem>>
    } else {
    }
    return
  }
  func.func @transform_0(%arg0: i32) -> (i32, i32) {
    %c0_i32 = arith.constant 0 : i32
    %c0_i32_0 = arith.constant 0 : i32
    return %arg0, %c0_i32 : i32, i32
  }
  func.func @transform_1(%arg0: i32) -> (i32, i32) {
    %c0_i32 = arith.constant 0 : i32
    %c0_i32_0 = arith.constant 0 : i32
    return %arg0, %c0_i32 : i32, i32
  }
  func.func @transform_2(%arg0: i32) -> (i32, i32) {
    %c0_i32 = arith.constant 0 : i32
    %c0_i32_0 = arith.constant 0 : i32
    %c0_i32_1 = arith.constant 0 : i32
    return %c0_i32, %c0_i32_0 : i32, i32
  }
}

</mosaic_0001>

<llo_original>
// kernel: tpu_custom_call.1
$region0: #{tpu_custom_call.1}
  #allocation0 [shape = 'u32[]', space=smem, size = 0x4, offset = 0x4, fixed_abs, tag = 'smem constant byte address 0x4 - core index']
  #allocation1 [shape = 'u32[144,128]{1,0:T(1,128)}', space=vmem, size = 0x12000, scoped, tag = 'internal scratch']
  #allocation2 [shape = 'f32[8,128]{1,0:T(8,128)}', space=vmem, size = 0x1000, scoped, tag = 'scratch operand']
  %s0 = inlined_call_operand.hbm [shape: f32[16,128], index: 0, kind: input, shape index: {}]
  %s1 = inlined_call_operand.hbm [shape: f32[16,128], index: 1, kind: input, shape index: {}]
  %s2 = inlined_call_operand.hbm [shape: f32[1,1], index: 2, kind: output, shape index: {}]
  %s3 = sld [smem:[#allocation0]]
  $region34: #{tpu_custom_call.1} parent=0
    _
  %s5 = ssub.s32 1, %s3
  %s6 = scalar_select 0, %s5, %s3
  $region1: #{tpu_custom_call.1} parent=0
    #allocation3 [shape = 'u8[8192]{0}', space=vmem, size = 0x2000, scoped, tag = 'input window, operand 0, single buffered']
    #allocation4 [shape = 's32[1]{0}', space=sflag, size = 0x4, scoped, tag = 'scoped memory for tpu_custom_call.1']
    #allocation5 [shape = 's32[1]{0}', space=sflag, size = 0x4, scoped, tag = 'scoped memory for tpu_custom_call.1']
    #allocation6 [shape = 'u8[8192]{0}', space=vmem, size = 0x2000, scoped, tag = 'input window, operand 1, single buffered']
    #allocation7 [shape = 's32[1]{0}', space=sflag, size = 0x4, scoped, tag = 'scoped memory for tpu_custom_call.1']
    #allocation8 [shape = 'u8[512]{0}', space=smem, size = 0x200, scoped, tag = 'output window, operand 0, single buffered']
    %7 = vsyncpa [#allocation4], 0
    %8 = vsyncpa [#allocation7], 0
    %9 = vsyncpa [#allocation5], 0
    // Predicated region
    $region2: #{tpu_custom_call.1} parent=1 // pred_check
      _
    $region3: #{tpu_custom_call.1} parent=1 // pred_check_branch
      %11 = sbr.rel (0) target = $region5
    $region4: #{tpu_custom_call.1} parent=1 // pred_region
      %s13 = ssub.s32 256, 256
      %14 = vsyncadd [#allocation4], %s13
      %s15 = sshll.u32 [#allocation3], 4
      %s16 = int_to_ptr.vmem [resolvable:$true] %s15
      %21 = dma.hbm_to_vmem [thread:$0]  %s0, 256, %s16, [#allocation4], 128, 128, 8
    $region5: #{tpu_custom_call.1} parent=1 // pred_fallthru
      _
    // Predicated region
    $region6: #{tpu_custom_call.1} parent=1 // pred_check
      _
    $region7: #{tpu_custom_call.1} parent=1 // pred_check_branch
      %23 = sbr.rel (0) target = $region9
    $region8: #{tpu_custom_call.1} parent=1 // pred_region
      %s25 = ssub.s32 256, 256
      %26 = vsyncadd [#allocation7], %s25
      %s27 = sshll.u32 [#allocation6], 4
      %s28 = int_to_ptr.vmem [resolvable:$true] %s27
      %33 = dma.hbm_to_vmem [thread:$0]  %s1, 256, %s28, [#allocation7], 128, 128, 8
    $region9: #{tpu_custom_call.1} parent=1 // pred_fallthru
      _
    // Predicated region
    $region10: #{tpu_custom_call.1} parent=1 // pred_check
      _
    $region11: #{tpu_custom_call.1} parent=1 // pred_check_branch
      %35 = sbr.rel (0) target = $region13
    $region12: #{tpu_custom_call.1} parent=1 // pred_region
      %36 = dma.done [#allocation4], 256
    $region13: #{tpu_custom_call.1} parent=1 // pred_fallthru
      _
    // Predicated region
    $region14: #{tpu_custom_call.1} parent=1 // pred_check
      _
    $region15: #{tpu_custom_call.1} parent=1 // pred_check_branch
      %38 = sbr.rel (0) target = $region17
    $region16: #{tpu_custom_call.1} parent=1 // pred_region
      %39 = dma.done [#allocation7], 256
    $region17: #{tpu_custom_call.1} parent=1 // pred_fallthru
      _
    %p40 = scmp.eq.s32.totalorder 0, 0
    // Predicated region
    $region18: #{tpu_custom_call.1} parent=1 // pred_check
      %p41 = pneg %p40
    $region19: #{tpu_custom_call.1} parent=1 // pred_check_branch
      %43 = sbr.rel (%p41) target = $region21
    $region20: #{tpu_custom_call.1} parent=1 // pred_region
      %44 = vst [vmem:[#allocation2] sm:$0xff] 0.0
    $region21: #{tpu_custom_call.1} parent=1 // pred_fallthru
      _
    %v45 = vld [vmem:[#allocation3] sm:$0xff]
    %v46 = vld [vmem:[#allocation3 + $0x8] sm:$0xff]
    %v47 = vlog2.pop %v45
    %v48 = vmul.f32 %v47, 0.6931472
    %v49 = vlog2.pop %v46
    %v50 = vmul.f32 %v49, 0.6931472
    %v51 = vld [vmem:[#allocation6] sm:$0xff]
    %v52 = vld [vmem:[#allocation6 + $0x8] sm:$0xff]
    %v53 = vlog2.pop %v51
    %v54 = vmul.f32 %v53, 0.6931472
    %v55 = vlog2.pop %v52
    %v56 = vmul.f32 %v55, 0.6931472
    %v57 = vsub.f32 %v48, %v54
    %v58 = vsub.f32 %v50, %v56
    %v59 = vmul.f32 %v57, %v57
    %v60 = vmul.f32 %v58, %v58
    %v61 = vld [vmem:[#allocation2] sm:$0xff]
    %v62 = vadd.f32 %v59, %v60
    %v63 = vadd.f32 %v61, %v62
    %64 = vst [vmem:[#allocation2] sm:$0xff] %v63
    // Predicated region
    $region22: #{tpu_custom_call.1} parent=1 // pred_check
      %p65 = pneg %p40
    $region23: #{tpu_custom_call.1} parent=1 // pred_check_branch
      %67 = sbr.rel (%p65) target = $region25
    $region24: #{tpu_custom_call.1} parent=1 // pred_region
      %v68 = vld [vmem:[#allocation2] sm:$0xff]
      %69 = vadd.xlane.f32.xlu0 %v68
      %v70 = vpop.xlane.xlu0 %69
      %v71 = vrot.slane %v70, 4
      %v72 = vadd.f32 %v70, %v71
      %v73 = vrot.slane %v72, 2
      %v74 = vadd.f32 %v72, %v73
      %v75 = vrot.slane %v74, 1
      %v76 = vadd.f32 %v74, %v75
      %s77 = vtos %v76
      %v78 = vrcp.pop 2048.0
      %s79 = vtos %v78
      %s80 = smul.f32 %s77, %s79
      %v81 = vstv %s80
      %v82 = vrsqrt.pop %v81
      %v83 = vmul.f32 %v81, %v82
      %vm84 = vcmp.eq.f32.partialorder %v81, inf
      %v85 = vsel %vm84, %v81, %v83
      %vm86 = vcmp.eq.f32.partialorder %v81, 0.0
      %v87 = vand.u32 %v81, 2147483648
      %v88 = vsel %vm86, %v87, %v85
      %s89 = vtos %v88
      %s90 = scalar_lea.smem [#allocation8], 0
      %91 = sst [smem:[%s90]] %s89
    $region25: #{tpu_custom_call.1} parent=1 // pred_fallthru
      _
    // Predicated region
    $region26: #{tpu_custom_call.1} parent=1 // pred_check
      _
    $region27: #{tpu_custom_call.1} parent=1 // pred_check_branch
      %93 = sbr.rel (0) target = $region29
    $region28: #{tpu_custom_call.1} parent=1 // pred_region
      %s95 = ssub.s32 16, 16
      %96 = vsyncadd [#allocation5], %s95
      %99 = dma.smem_to_hbm [#allocation8], 16, %s2, [#allocation5]
    $region29: #{tpu_custom_call.1} parent=1 // pred_fallthru
      _
    // Predicated region
    $region30: #{tpu_custom_call.1} parent=1 // pred_check
      _
    $region31: #{tpu_custom_call.1} parent=1 // pred_check_branch
      %101 = sbr.rel (0) target = $region33
    $region32: #{tpu_custom_call.1} parent=1 // pred_region
      %102 = dma.done [#allocation5], 16
    $region33: #{tpu_custom_call.1} parent=1 // pred_fallthru
      _
    %103 = sfence
    %104 = vsyncpa [#allocation4], 1
    %105 = vsyncpa [#allocation7], 1
    %106 = vsyncpa [#allocation5], 1

</llo_original>
